<compile_context>
chip_gen: v5e
topology: v5e:2x2
jax: 0.10.0
libtpu: 0.0.40
codegen_flags: <defaults>
</compile_context>

<pallas_src>
import functools

import jax
import jax.numpy as jnp
from jax.experimental import pallas as pl
from jax.experimental.pallas import tpu as pltpu


def _action_value_dis_kernel(obs_ref,      # [T*B, D]   time-major flattened obs (bf16)
                             wih_ref,      # [D, H]     RNN input->hidden, transposed (bf16)
                             whh_ref,      # [H, H]     RNN hidden->hidden, transposed (bf16)
                             brnn_ref,     # [1, H]     b_ih + b_hh combined (f32)
                             w1_ref,       # [H, H1]    MLP layer 1, transposed (bf16)
                             b1_ref,       # [1, H1]    (f32)
                             w2_ref,       # [H1, Apad] MLP layer 2, transposed + lane-padded (bf16)
                             b2_ref,       # [1, Apad]  (f32)
                             out_ref,      # [B, Apad]  Q-values (f32, lane-dense)
                             *, T, B):
    H = whh_ref.shape[0]

    # ---- hoisted input projection: one big MXU matmul, bias folded in once ----
    xproj = (jnp.dot(obs_ref[...], wih_ref[...],
                     preferred_element_type=jnp.float32)
             + brnn_ref[...])                               # [T*B, H] f32

    whh = whh_ref[...]                                      # [H, H] bf16

    # ---- serial recurrence, fully unrolled (T static): h = tanh(xproj_t + h @ Whh) ----
    h = jnp.zeros((B, H), dtype=jnp.float32)
    for t in range(T):                                      # static unroll
        pre = xproj[t * B:(t + 1) * B, :] + jnp.dot(
            h.astype(jnp.bfloat16), whh, preferred_element_type=jnp.float32)
        h = jnp.tanh(pre)                                   # f32 state / f32 tanh

    # ---- MLP Q head: Linear -> ReLU -> Linear (Identity output) ----
    z1 = jnp.dot(h.astype(jnp.bfloat16), w1_ref[...],
                 preferred_element_type=jnp.float32) + b1_ref[...]
    z1 = jnp.maximum(z1, 0.0)                               # ReLU
    q = jnp.dot(z1.astype(jnp.bfloat16), w2_ref[...],
                preferred_element_type=jnp.float32) + b2_ref[...]
    out_ref[...] = q.astype(out_ref.dtype)                  # lane-dense [B, Apad] store


def action_value_dis_forward(obs, params):
    """obs: [B, T, D] float32 (batch_first, like PyTorch). Returns [B, act_num]."""
    B, T, D = obs.shape
    H = params["w_hh"].shape[0]
    H1 = params["w1"].shape[0]
    A = params["w2"].shape[0]
    A_pad = ((A + 127) // 128) * 128                        # lane-dense output width

    # glue: time-major flatten + pre-transpose weights ([out,in] -> [in,out]),
    # bf16 matmul operands, f32 biases, lane-padded final layer.
    obs2d = jnp.transpose(obs, (1, 0, 2)).reshape(T * B, D).astype(jnp.bfloat16)
    wih_t = params["w_ih"].T.astype(jnp.bfloat16)           # [D, H]
    whh_t = params["w_hh"].T.astype(jnp.bfloat16)           # [H, H]
    brnn = (params["b_ih"] + params["b_hh"]).reshape(1, H).astype(jnp.float32)
    w1_t = params["w1"].T.astype(jnp.bfloat16)              # [H, H1]
    b1 = params["b1"].reshape(1, H1).astype(jnp.float32)
    w2_t = jnp.zeros((H1, A_pad), jnp.bfloat16).at[:, :A].set(
        params["w2"].T.astype(jnp.bfloat16))                # [H1, A_pad]
    b2 = jnp.zeros((1, A_pad), jnp.float32).at[:, :A].set(
        params["b2"].astype(jnp.float32))                   # [1, A_pad]

    vmem = pl.BlockSpec(memory_space=pltpu.MemorySpace.VMEM)
    kernel = functools.partial(_action_value_dis_kernel, T=T, B=B)
    q_pad = pl.pallas_call(
        kernel,
        out_shape=jax.ShapeDtypeStruct((B, A_pad), jnp.float32),
        in_specs=[vmem] * 8,
        out_specs=vmem,
    )(obs2d, wih_t, whh_t, brnn, w1_t, b1, w2_t, b2)
    return q_pad[:, :A]


def _reference_forward(obs, params):
    """Pure-JAX f32 reference matching nn.RNN(batch_first) + mlp semantics."""
    B, T, D = obs.shape
    H = params["w_hh"].shape[0]
    h = jnp.zeros((B, H), dtype=jnp.float32)
    for t in range(T):
        h = jnp.tanh(obs[:, t, :] @ params["w_ih"].T + params["b_ih"]
                     + h @ params["w_hh"].T + params["b_hh"])
    z1 = jnp.maximum(h @ params["w1"].T + params["b1"], 0.0)
    return z1 @ params["w2"].T + params["b2"]


if __name__ == "__main__":
    # module config (synthetic, deterministic)
    B, T = 8, 8          # batch, sequence length
    D = 16               # obs_dim = kwargs['obs_dim'][1]
    hidden_sizes = (32, 32)
    A = 10               # act_num

    H, H1 = hidden_sizes

    key = jax.random.PRNGKey(0)
    ks = jax.random.split(key, 9)
    scale = 0.1
    params = {
        "w_ih": scale * jax.random.normal(ks[0], (H, D), jnp.float32),
        "w_hh": scale * jax.random.normal(ks[1], (H, H), jnp.float32),
        "b_ih": scale * jax.random.normal(ks[2], (H,), jnp.float32),
        "b_hh": scale * jax.random.normal(ks[3], (H,), jnp.float32),
        "w1":   scale * jax.random.normal(ks[4], (H1, H), jnp.float32),
        "b1":   scale * jax.random.normal(ks[5], (H1,), jnp.float32),
        "w2":   scale * jax.random.normal(ks[6], (A, H1), jnp.float32),
        "b2":   scale * jax.random.normal(ks[7], (A,), jnp.float32),
    }
    obs = jax.random.normal(ks[8], (B, T, D), jnp.float32)

    q = action_value_dis_forward(obs, params)
    q = jax.block_until_ready(q)

    q_ref = _reference_forward(obs, params)
    assert q.shape == (B, A)
    # bf16 MXU operands (f32 accumulation) drift ~1e-3 vs the f32 reference.
    assert jnp.allclose(q, q_ref, atol=2e-2, rtol=2e-2), "mismatch vs reference"

    print("KERNEL_OK")
</pallas_src>

<mosaic_0001>
module attributes {stable_mosaic.version = 11 : i64} {
  func.func @_action_value_dis_kernel(%arg0: memref<64x16xbf16, #tpu.memory_space<vmem>>, %arg1: memref<16x32xbf16, #tpu.memory_space<vmem>>, %arg2: memref<32x32xbf16, #tpu.memory_space<vmem>>, %arg3: memref<1x32xf32, #tpu.memory_space<vmem>>, %arg4: memref<32x32xbf16, #tpu.memory_space<vmem>>, %arg5: memref<1x32xf32, #tpu.memory_space<vmem>>, %arg6: memref<32x128xbf16, #tpu.memory_space<vmem>>, %arg7: memref<1x128xf32, #tpu.memory_space<vmem>>, %arg8: memref<8x128xf32, #tpu.memory_space<vmem>>) attributes {dimension_semantics = [], scalar_prefetch = 0 : i64, scratch_operands = 0 : i64, tpu.core_type = #tpu.core_type<tc>} {
    %c0 = arith.constant 0 : index
    %c0_0 = arith.constant 0 : index
    %0 = vector.load %arg0[%c0, %c0_0] : memref<64x16xbf16, #tpu.memory_space<vmem>>, vector<64x16xbf16>
    %c0_1 = arith.constant 0 : index
    %c0_2 = arith.constant 0 : index
    %1 = vector.load %arg1[%c0_1, %c0_2] : memref<16x32xbf16, #tpu.memory_space<vmem>>, vector<16x32xbf16>
    %cst = arith.constant dense<0.000000e+00> : vector<64x32xf32>
    %2 = tpu.matmul %0, %1, %cst {dimension_numbers = #tpu.dot_dimension_numbers<[1], [0], [0], [1], [0, 0, 1, 1], [], []>} : vector<64x16xbf16>, vector<16x32xbf16>, vector<64x32xf32> -> vector<64x32xf32>
    %c0_3 = arith.constant 0 : index
    %c0_4 = arith.constant 0 : index
    %3 = vector.load %arg3[%c0_3, %c0_4] : memref<1x32xf32, #tpu.memory_space<vmem>>, vector<1x32xf32>
    %4 = vector.broadcast %3 : vector<1x32xf32> to vector<64x32xf32>
    %5 = arith.addf %2, %4 : vector<64x32xf32>
    %c0_5 = arith.constant 0 : index
    %c0_6 = arith.constant 0 : index
    %6 = vector.load %arg2[%c0_5, %c0_6] : memref<32x32xbf16, #tpu.memory_space<vmem>>, vector<32x32xbf16>
    %cst_7 = arith.constant 0.000000e+00 : f32
    %7 = vector.broadcast %cst_7 : f32 to vector<8x32xf32>
    %8 = vector.extract_strided_slice %5 {offsets = [0, 0], sizes = [8, 32], strides = [1, 1]} : vector<64x32xf32> to vector<8x32xf32>
    %9 = arith.truncf %7 : vector<8x32xf32> to vector<8x32xbf16>
    %cst_8 = arith.constant dense<0.000000e+00> : vector<8x32xf32>
    %10 = tpu.matmul %9, %6, %cst_8 {dimension_numbers = #tpu.dot_dimension_numbers<[1], [0], [0], [1], [0, 0, 1, 1], [], []>} : vector<8x32xbf16>, vector<32x32xbf16>, vector<8x32xf32> -> vector<8x32xf32>
    %11 = arith.addf %8, %10 : vector<8x32xf32>
    %12 = math.tanh %11 : vector<8x32xf32>
    %13 = vector.extract_strided_slice %5 {offsets = [8, 0], sizes = [8, 32], strides = [1, 1]} : vector<64x32xf32> to vector<8x32xf32>
    %14 = arith.truncf %12 : vector<8x32xf32> to vector<8x32xbf16>
    %cst_9 = arith.constant dense<0.000000e+00> : vector<8x32xf32>
    %15 = tpu.matmul %14, %6, %cst_9 {dimension_numbers = #tpu.dot_dimension_numbers<[1], [0], [0], [1], [0, 0, 1, 1], [], []>} : vector<8x32xbf16>, vector<32x32xbf16>, vector<8x32xf32> -> vector<8x32xf32>
    %16 = arith.addf %13, %15 : vector<8x32xf32>
    %17 = math.tanh %16 : vector<8x32xf32>
    %18 = vector.extract_strided_slice %5 {offsets = [16, 0], sizes = [8, 32], strides = [1, 1]} : vector<64x32xf32> to vector<8x32xf32>
    %19 = arith.truncf %17 : vector<8x32xf32> to vector<8x32xbf16>
    %cst_10 = arith.constant dense<0.000000e+00> : vector<8x32xf32>
    %20 = tpu.matmul %19, %6, %cst_10 {dimension_numbers = #tpu.dot_dimension_numbers<[1], [0], [0], [1], [0, 0, 1, 1], [], []>} : vector<8x32xbf16>, vector<32x32xbf16>, vector<8x32xf32> -> vector<8x32xf32>
    %21 = arith.addf %18, %20 : vector<8x32xf32>
    %22 = math.tanh %21 : vector<8x32xf32>
    %23 = vector.extract_strided_slice %5 {offsets = [24, 0], sizes = [8, 32], strides = [1, 1]} : vector<64x32xf32> to vector<8x32xf32>
    %24 = arith.truncf %22 : vector<8x32xf32> to vector<8x32xbf16>
    %cst_11 = arith.constant dense<0.000000e+00> : vector<8x32xf32>
    %25 = tpu.matmul %24, %6, %cst_11 {dimension_numbers = #tpu.dot_dimension_numbers<[1], [0], [0], [1], [0, 0, 1, 1], [], []>} : vector<8x32xbf16>, vector<32x32xbf16>, vector<8x32xf32> -> vector<8x32xf32>
    %26 = arith.addf %23, %25 : vector<8x32xf32>
    %27 = math.tanh %26 : vector<8x32xf32>
    %28 = vector.extract_strided_slice %5 {offsets = [32, 0], sizes = [8, 32], strides = [1, 1]} : vector<64x32xf32> to vector<8x32xf32>
    %29 = arith.truncf %27 : vector<8x32xf32> to vector<8x32xbf16>
    %cst_12 = arith.constant dense<0.000000e+00> : vector<8x32xf32>
    %30 = tpu.matmul %29, %6, %cst_12 {dimension_numbers = #tpu.dot_dimension_numbers<[1], [0], [0], [1], [0, 0, 1, 1], [], []>} : vector<8x32xbf16>, vector<32x32xbf16>, vector<8x32xf32> -> vector<8x32xf32>
    %31 = arith.addf %28, %30 : vector<8x32xf32>
    %32 = math.tanh %31 : vector<8x32xf32>
    %33 = vector.extract_strided_slice %5 {offsets = [40, 0], sizes = [8, 32], strides = [1, 1]} : vector<64x32xf32> to vector<8x32xf32>
    %34 = arith.truncf %32 : vector<8x32xf32> to vector<8x32xbf16>
    %cst_13 = arith.constant dense<0.000000e+00> : vector<8x32xf32>
    %35 = tpu.matmul %34, %6, %cst_13 {dimension_numbers = #tpu.dot_dimension_numbers<[1], [0], [0], [1], [0, 0, 1, 1], [], []>} : vector<8x32xbf16>, vector<32x32xbf16>, vector<8x32xf32> -> vector<8x32xf32>
    %36 = arith.addf %33, %35 : vector<8x32xf32>
    %37 = math.tanh %36 : vector<8x32xf32>
    %38 = vector.extract_strided_slice %5 {offsets = [48, 0], sizes = [8, 32], strides = [1, 1]} : vector<64x32xf32> to vector<8x32xf32>
    %39 = arith.truncf %37 : vector<8x32xf32> to vector<8x32xbf16>
    %cst_14 = arith.constant dense<0.000000e+00> : vector<8x32xf32>
    %40 = tpu.matmul %39, %6, %cst_14 {dimension_numbers = #tpu.dot_dimension_numbers<[1], [0], [0], [1], [0, 0, 1, 1], [], []>} : vector<8x32xbf16>, vector<32x32xbf16>, vector<8x32xf32> -> vector<8x32xf32>
    %41 = arith.addf %38, %40 : vector<8x32xf32>
    %42 = math.tanh %41 : vector<8x32xf32>
    %43 = vector.extract_strided_slice %5 {offsets = [56, 0], sizes = [8, 32], strides = [1, 1]} : vector<64x32xf32> to vector<8x32xf32>
    %44 = arith.truncf %42 : vector<8x32xf32> to vector<8x32xbf16>
    %cst_15 = arith.constant dense<0.000000e+00> : vector<8x32xf32>
    %45 = tpu.matmul %44, %6, %cst_15 {dimension_numbers = #tpu.dot_dimension_numbers<[1], [0], [0], [1], [0, 0, 1, 1], [], []>} : vector<8x32xbf16>, vector<32x32xbf16>, vector<8x32xf32> -> vector<8x32xf32>
    %46 = arith.addf %43, %45 : vector<8x32xf32>
    %47 = math.tanh %46 : vector<8x32xf32>
    %48 = arith.truncf %47 : vector<8x32xf32> to vector<8x32xbf16>
    %c0_16 = arith.constant 0 : index
    %c0_17 = arith.constant 0 : index
    %49 = vector.load %arg4[%c0_16, %c0_17] : memref<32x32xbf16, #tpu.memory_space<vmem>>, vector<32x32xbf16>
    %cst_18 = arith.constant dense<0.000000e+00> : vector<8x32xf32>
    %50 = tpu.matmul %48, %49, %cst_18 {dimension_numbers = #tpu.dot_dimension_numbers<[1], [0], [0], [1], [0, 0, 1, 1], [], []>} : vector<8x32xbf16>, vector<32x32xbf16>, vector<8x32xf32> -> vector<8x32xf32>
    %c0_19 = arith.constant 0 : index
    %c0_20 = arith.constant 0 : index
    %51 = vector.load %arg5[%c0_19, %c0_20] : memref<1x32xf32, #tpu.memory_space<vmem>>, vector<1x32xf32>
    %52 = vector.broadcast %51 : vector<1x32xf32> to vector<8x32xf32>
    %53 = arith.addf %50, %52 : vector<8x32xf32>
    %cst_21 = arith.constant 0.000000e+00 : f32
    %54 = vector.broadcast %cst_21 : f32 to vector<8x32xf32>
    %55 = arith.maximumf %53, %54 : vector<8x32xf32>
    %56 = arith.truncf %55 : vector<8x32xf32> to vector<8x32xbf16>
    %c0_22 = arith.constant 0 : index
    %c0_23 = arith.constant 0 : index
    %57 = vector.load %arg6[%c0_22, %c0_23] : memref<32x128xbf16, #tpu.memory_space<vmem>>, vector<32x128xbf16>
    %cst_24 = arith.constant dense<0.000000e+00> : vector<8x128xf32>
    %58 = tpu.matmul %56, %57, %cst_24 {dimension_numbers = #tpu.dot_dimension_numbers<[1], [0], [0], [1], [0, 0, 1, 1], [], []>} : vector<8x32xbf16>, vector<32x128xbf16>, vector<8x128xf32> -> vector<8x128xf32>
    %c0_25 = arith.constant 0 : index
    %c0_26 = arith.constant 0 : index
    %59 = vector.load %arg7[%c0_25, %c0_26] : memref<1x128xf32, #tpu.memory_space<vmem>>, vector<1x128xf32>
    %60 = vector.broadcast %59 : vector<1x128xf32> to vector<8x128xf32>
    %61 = arith.addf %58, %60 : vector<8x128xf32>
    %c0_27 = arith.constant 0 : index
    %c0_28 = arith.constant 0 : index
    %62 = vector.load %arg8[%c0_27, %c0_28] : memref<8x128xf32, #tpu.memory_space<vmem>>, vector<8x128xf32>
    tpu.vector_store %arg8[%c0_27, %c0_28], %61 {strides = array<i32>} : memref<8x128xf32, #tpu.memory_space<vmem>>, vector<8x128xf32>,
    return
  }
}

</mosaic_0001>

<llo_original>
// kernel: tpu_custom_call.1
$region0: #{tpu_custom_call.1}
  #allocation0 [shape = 'u32[]', space=smem, size = 0x4, offset = 0x4, fixed_abs, tag = 'smem constant byte address 0x4 - core index']
  #allocation1 [shape = 'u32[72,128]{1,0:T(1,128)}', space=vmem, size = 0x9000, scoped, tag = 'internal scratch']
  %s0 = inlined_call_operand.vmem [shape: bf16[64,16], index: 0, kind: input, shape index: {}]
  %s1 = inlined_call_operand.vmem [shape: bf16[16,32], index: 1, kind: input, shape index: {}]
  %s2 = inlined_call_operand.vmem [shape: bf16[32,32], index: 2, kind: input, shape index: {}]
  %s3 = inlined_call_operand.vmem [shape: f32[1,32], index: 3, kind: input, shape index: {}]
  %s4 = inlined_call_operand.vmem [shape: bf16[32,32], index: 4, kind: input, shape index: {}]
  %s5 = inlined_call_operand.vmem [shape: f32[1,32], index: 5, kind: input, shape index: {}]
  %s6 = inlined_call_operand.hbm [shape: bf16[32,128], index: 6, kind: input, shape index: {}]
  %s7 = inlined_call_operand.vmem [shape: f32[1,128], index: 7, kind: input, shape index: {}]
  %s8 = inlined_call_operand.hbm [shape: f32[8,128], index: 8, kind: output, shape index: {}]
  %s9 = sld [smem:[#allocation0]]
  $region46: #{tpu_custom_call.1} parent=0
    _
  %s11 = ssub.s32 1, %s9
  %s12 = scalar_select 0, %s11, %s9
  $region1: #{tpu_custom_call.1} parent=0
    #allocation2 [shape = 'u8[8192]{0}', space=vmem, size = 0x2000, scoped, tag = 'input window, operand 6, single buffered']
    #allocation3 [shape = 's32[1]{0}', space=sflag, size = 0x4, scoped, tag = 'scoped memory for tpu_custom_call.1']
    #allocation4 [shape = 's32[1]{0}', space=sflag, size = 0x4, scoped, tag = 'scoped memory for tpu_custom_call.1']
    #allocation5 [shape = 'u8[4096]{0}', space=vmem, size = 0x1000, scoped, tag = 'output window, operand 0, single buffered']
    %13 = vsyncpa [#allocation3], 0
    %14 = vsyncpa [#allocation4], 0
    // Predicated region
    $region2: #{tpu_custom_call.1} parent=1 // pred_check
      _
    $region3: #{tpu_custom_call.1} parent=1 // pred_check_branch
      %16 = sbr.rel (0) target = $region5
    $region4: #{tpu_custom_call.1} parent=1 // pred_region
      _
    $region5: #{tpu_custom_call.1} parent=1 // pred_fallthru
      _
    // Predicated region
    $region6: #{tpu_custom_call.1} parent=1 // pred_check
      _
    $region7: #{tpu_custom_call.1} parent=1 // pred_check_branch
      %18 = sbr.rel (0) target = $region9
    $region8: #{tpu_custom_call.1} parent=1 // pred_region
      _
    $region9: #{tpu_custom_call.1} parent=1 // pred_fallthru
      _
    // Predicated region
    $region10: #{tpu_custom_call.1} parent=1 // pred_check
      _
    $region11: #{tpu_custom_call.1} parent=1 // pred_check_branch
      %20 = sbr.rel (0) target = $region13
    $region12: #{tpu_custom_call.1} parent=1 // pred_region
      _
    $region13: #{tpu_custom_call.1} parent=1 // pred_fallthru
      _
    // Predicated region
    $region14: #{tpu_custom_call.1} parent=1 // pred_check
      _
    $region15: #{tpu_custom_call.1} parent=1 // pred_check_branch
      %22 = sbr.rel (0) target = $region17
    $region16: #{tpu_custom_call.1} parent=1 // pred_region
      _
    $region17: #{tpu_custom_call.1} parent=1 // pred_fallthru
      _
    // Predicated region
    $region18: #{tpu_custom_call.1} parent=1 // pred_check
      _
    $region19: #{tpu_custom_call.1} parent=1 // pred_check_branch
      %24 = sbr.rel (0) target = $region21
    $region20: #{tpu_custom_call.1} parent=1 // pred_region
      _
    $region21: #{tpu_custom_call.1} parent=1 // pred_fallthru
      _
    // Predicated region
    $region22: #{tpu_custom_call.1} parent=1 // pred_check
      _
    $region23: #{tpu_custom_call.1} parent=1 // pred_check_branch
      %26 = sbr.rel (0) target = $region25
    $region24: #{tpu_custom_call.1} parent=1 // pred_region
      _
    $region25: #{tpu_custom_call.1} parent=1 // pred_fallthru
      _
    // Predicated region
    $region26: #{tpu_custom_call.1} parent=1 // pred_check
      _
    $region27: #{tpu_custom_call.1} parent=1 // pred_check_branch
      %28 = sbr.rel (0) target = $region29
    $region28: #{tpu_custom_call.1} parent=1 // pred_region
      %30 = vsyncadd [#allocation3], 0
      %s31 = sshll.u32 %s6, 4
      %s32 = int_to_ptr.hbm [resolvable:$true] %s31
      %s33 = sshll.u32 [#allocation2], 4
      %s34 = int_to_ptr.vmem [resolvable:$true] %s33
      %39 = dma.hbm_to_vmem [thread:$0]  %s32, 256, %s34, [#allocation3], 64, 64, 4
    $region29: #{tpu_custom_call.1} parent=1 // pred_fallthru
      _
    // Predicated region
    $region30: #{tpu_custom_call.1} parent=1 // pred_check
      _
    $region31: #{tpu_custom_call.1} parent=1 // pred_check_branch
      %41 = sbr.rel (0) target = $region33
    $region32: #{tpu_custom_call.1} parent=1 // pred_region
      _
    $region33: #{tpu_custom_call.1} parent=1 // pred_fallthru
      _
    // Predicated region
    $region34: #{tpu_custom_call.1} parent=1 // pred_check
      _
    $region35: #{tpu_custom_call.1} parent=1 // pred_check_branch
      %43 = sbr.rel (0) target = $region37
    $region36: #{tpu_custom_call.1} parent=1 // pred_region
      %45 = dma.done [#allocation3], 256
    $region37: #{tpu_custom_call.1} parent=1 // pred_fallthru
      _
    %v47 = vld [vmem:[%s0] sm:$0xf]
    %v48 = vld [vmem:[%s0 + $0x4] sm:$0xf]
    %v49 = vld [vmem:[%s0 + $0x8] sm:$0xf]
    %v50 = vld [vmem:[%s0 + $0xc] sm:$0xf]
    %v51 = vld [vmem:[%s0 + $0x10] sm:$0xf]
    %v52 = vld [vmem:[%s0 + $0x14] sm:$0xf]
    %v53 = vld [vmem:[%s0 + $0x18] sm:$0xf]
    %v54 = vld [vmem:[%s0 + $0x1c] sm:$0xf]
    %v55 = vld [vmem:[%s1] sm:$0xf]
    %v56 = vld [vmem:[%s1 + $0x4] sm:$0xf]
    %v57 = vld [vmem:[%s3] sm:$0x1]
    %v59 = vperm.slane %v57, 0
    %v69 = vunpack.c.l.b16 %v47
    %v70 = vunpack.c.l.b16 %v48
    %v71 = vunpack.c.l.b16 %v49
    %v72 = vunpack.c.l.b16 %v50
    %v73 = vunpack.c.l.b16 %v51
    %v74 = vunpack.c.l.b16 %v52
    %v75 = vunpack.c.l.b16 %v53
    %v76 = vunpack.c.l.b16 %v54
    %v77 = vpack.c.b16 %v70, %v69
    %v78 = vpack.c.b16 %v72, %v71
    %v79 = vpack.c.b16 %v74, %v73
    %v80 = vpack.c.b16 %v76, %v75
    %v83 = vunpack.c.l.b16 %v55
    %v84 = vunpack.c.l.b16 %v56
    %v85 = vpack.c.b16 %v84, %v83
    %vm87 = vcmask 130048
    %v89 = vsel %vm87, %v77, 0
    %v92 = vsel %vm87, %v78, 0
    %v95 = vsel %vm87, %v79, 0
    %v98 = vsel %vm87, %v80, 0
    %100 = vmatpush.bf16.msra.mxu0 0
    %101 = vmatpush.bf16.msra.mxu0 0
    %102 = vmatpush.bf16.msra.mxu0 0
    %103 = vmatpush.bf16.msra.mxu0 0
    %104 = vmatpush.bf16.msra.mxu0 0
    %105 = vmatpush.bf16.msra.mxu0 0
    %106 = vmatpush.bf16.msra.mxu0 0
    %107 = vmatpush.bf16.msra.mxu0 %v85
    %108 = vmatmul.bf16.gmra.mxu0 %v89
    %v109 = vpop.f32.mrf.mxu0
    %v110 = vadd.f32 %v59, %v109
    %v111 = vpop.f32.mrf.mxu0
    %v112 = vadd.f32 %v59, %v111
    %113 = vmatmul.bf16.gmra.mxu0 %v92
    %v114 = vpop.f32.mrf.mxu0
    %v115 = vadd.f32 %v59, %v114
    %v116 = vpop.f32.mrf.mxu0
    %v117 = vadd.f32 %v59, %v116
    %118 = vmatmul.bf16.gmra.mxu0 %v95
    %v119 = vpop.f32.mrf.mxu0
    %v120 = vadd.f32 %v59, %v119
    %v121 = vpop.f32.mrf.mxu0
    %v122 = vadd.f32 %v59, %v121
    %123 = vmatmul.bf16.gmra.mxu0 %v98
    %v124 = vpop.f32.mrf.mxu0
    %v125 = vadd.f32 %v59, %v124
    %v126 = vpop.f32.mrf.mxu0
    %v127 = vadd.f32 %v59, %v126
    %128 = vdwg.mxu0
    %v129 = vld [vmem:[%s2] sm:$0xf]
    %v130 = vld [vmem:[%s2 + $0x4] sm:$0xf]
    %v131 = vld [vmem:[%s2 + $0x8] sm:$0xf]
    %v132 = vld [vmem:[%s2 + $0xc] sm:$0xf]
    %v137 = vunpack.c.l.b16 %v129
    %v138 = vunpack.c.l.b16 %v130
    %v139 = vunpack.c.l.b16 %v131
    %v140 = vunpack.c.l.b16 %v132
    %v141 = vpack.c.b16 %v138, %v137
    %v142 = vpack.c.b16 %v140, %v139
    %vm145 = vcmask 261120
    %v147 = vsel %vm145, 0, 0
    %149 = vmatpush.bf16.msra.mxu0 0
    %150 = vmatpush.bf16.msra.mxu0 0
    %151 = vmatpush.bf16.msra.mxu0 0
    %152 = vmatpush.bf16.msra.mxu0 0
    %153 = vmatpush.bf16.msra.mxu0 0
    %154 = vmatpush.bf16.msra.mxu0 0
    %155 = vmatpush.bf16.msra.mxu0 %v142
    %156 = vmatpush.bf16.msra.mxu0 %v141
    %157 = vmatmul.bf16.gmra.mxu0 %v147
    %v158 = vpop.f32.mrf.mxu0
    %v159 = vadd.f32 0.0, %v158
    %v160 = vpop.f32.mrf.mxu0
    %161 = vdwg.mxu0
    %v162 = vadd.f32 %v110, %v159
    %v163 = vtanh.pop %v162
    %v164 = vpack.c.bf16 %v163, %v163
    %v166 = vsel %vm145, %v164, 0
    %168 = vmatpush.bf16.msra.mxu0 0
    %169 = vmatpush.bf16.msra.mxu0 0
    %170 = vmatpush.bf16.msra.mxu0 0
    %171 = vmatpush.bf16.msra.mxu0 0
    %172 = vmatpush.bf16.msra.mxu0 0
    %173 = vmatpush.bf16.msra.mxu0 0
    %174 = vmatpush.bf16.msra.mxu0 %v142
    %175 = vmatpush.bf16.msra.mxu0 %v141
    %176 = vmatmul.bf16.gmra.mxu0 %v166
    %v177 = vpop.f32.mrf.mxu0
    %v178 = vadd.f32 0.0, %v177
    %v179 = vpop.f32.mrf.mxu0
    %180 = vdwg.mxu0
    %v181 = vadd.f32 %v112, %v178
    %v182 = vtanh.pop %v181
    %v183 = vpack.c.bf16 %v182, %v182
    %v185 = vsel %vm145, %v183, 0
    %187 = vmatpush.bf16.msra.mxu0 0
    %188 = vmatpush.bf16.msra.mxu0 0
    %189 = vmatpush.bf16.msra.mxu0 0
    %190 = vmatpush.bf16.msra.mxu0 0
    %191 = vmatpush.bf16.msra.mxu0 0
    %192 = vmatpush.bf16.msra.mxu0 0
    %193 = vmatpush.bf16.msra.mxu0 %v142
    %194 = vmatpush.bf16.msra.mxu0 %v141
    %195 = vmatmul.bf16.gmra.mxu0 %v185
    %v196 = vpop.f32.mrf.mxu0
    %v197 = vadd.f32 0.0, %v196
    %v198 = vpop.f32.mrf.mxu0
    %199 = vdwg.mxu0
    %v200 = vadd.f32 %v115, %v197
    %v201 = vtanh.pop %v200
    %v202 = vpack.c.bf16 %v201, %v201
    %v204 = vsel %vm145, %v202, 0
    %206 = vmatpush.bf16.msra.mxu0 0
    %207 = vmatpush.bf16.msra.mxu0 0
    %208 = vmatpush.bf16.msra.mxu0 0
    %209 = vmatpush.bf16.msra.mxu0 0
    %210 = vmatpush.bf16.msra.mxu0 0
    %211 = vmatpush.bf16.msra.mxu0 0
    %212 = vmatpush.bf16.msra.mxu0 %v142
    %213 = vmatpush.bf16.msra.mxu0 %v141
    %214 = vmatmul.bf16.gmra.mxu0 %v204
    %v215 = vpop.f32.mrf.mxu0
    %v216 = vadd.f32 0.0, %v215
    %v217 = vpop.f32.mrf.mxu0
    %218 = vdwg.mxu0
    %v219 = vadd.f32 %v117, %v216
    %v220 = vtanh.pop %v219
    %v221 = vpack.c.bf16 %v220, %v220
    %v223 = vsel %vm145, %v221, 0
    %225 = vmatpush.bf16.msra.mxu0 0
    %226 = vmatpush.bf16.msra.mxu0 0
    %227 = vmatpush.bf16.msra.mxu0 0
    %228 = vmatpush.bf16.msra.mxu0 0
    %229 = vmatpush.bf16.msra.mxu0 0
    %230 = vmatpush.bf16.msra.mxu0 0
    %231 = vmatpush.bf16.msra.mxu0 %v142
    %232 = vmatpush.bf16.msra.mxu0 %v141
    %233 = vmatmul.bf16.gmra.mxu0 %v223
    %v234 = vpop.f32.mrf.mxu0
    %v235 = vadd.f32 0.0, %v234
    %v236 = vpop.f32.mrf.mxu0
    %237 = vdwg.mxu0
    %v238 = vadd.f32 %v120, %v235
    %v239 = vtanh.pop %v238
    %v240 = vpack.c.bf16 %v239, %v239
    %v242 = vsel %vm145, %v240, 0
    %244 = vmatpush.bf16.msra.mxu0 0
    %245 = vmatpush.bf16.msra.mxu0 0
    %246 = vmatpush.bf16.msra.mxu0 0
    %247 = vmatpush.bf16.msra.mxu0 0
    %248 = vmatpush.bf16.msra.mxu0 0
    %249 = vmatpush.bf16.msra.mxu0 0
    %250 = vmatpush.bf16.msra.mxu0 %v142
    %251 = vmatpush.bf16.msra.mxu0 %v141
    %252 = vmatmul.bf16.gmra.mxu0 %v242
    %v253 = vpop.f32.mrf.mxu0
    %v254 = vadd.f32 0.0, %v253
    %v255 = vpop.f32.mrf.mxu0
    %256 = vdwg.mxu0
    %v257 = vadd.f32 %v122, %v254
    %v258 = vtanh.pop %v257
    %v259 = vpack.c.bf16 %v258, %v258
    %v261 = vsel %vm145, %v259, 0
    %263 = vmatpush.bf16.msra.mxu0 0
    %264 = vmatpush.bf16.msra.mxu0 0
    %265 = vmatpush.bf16.msra.mxu0 0
    %266 = vmatpush.bf16.msra.mxu0 0
    %267 = vmatpush.bf16.msra.mxu0 0
    %268 = vmatpush.bf16.msra.mxu0 0
    %269 = vmatpush.bf16.msra.mxu0 %v142
    %270 = vmatpush.bf16.msra.mxu0 %v141
    %271 = vmatmul.bf16.gmra.mxu0 %v261
    %v272 = vpop.f32.mrf.mxu0
    %v273 = vadd.f32 0.0, %v272
    %v274 = vpop.f32.mrf.mxu0
    %275 = vdwg.mxu0
    %v276 = vadd.f32 %v125, %v273
    %v277 = vtanh.pop %v276
    %v278 = vpack.c.bf16 %v277, %v277
    %v280 = vsel %vm145, %v278, 0
    %282 = vmatpush.bf16.msra.mxu0 0
    %283 = vmatpush.bf16.msra.mxu0 0
    %284 = vmatpush.bf16.msra.mxu0 0
    %285 = vmatpush.bf16.msra.mxu0 0
    %286 = vmatpush.bf16.msra.mxu0 0
    %287 = vmatpush.bf16.msra.mxu0 0
    %288 = vmatpush.bf16.msra.mxu0 %v142
    %289 = vmatpush.bf16.msra.mxu0 %v141
    %290 = vmatmul.bf16.gmra.mxu0 %v280
    %v291 = vpop.f32.mrf.mxu0
    %v292 = vadd.f32 0.0, %v291
    %v293 = vpop.f32.mrf.mxu0
    %294 = vdwg.mxu0
    %v295 = vadd.f32 %v127, %v292
    %v296 = vtanh.pop %v295
    %v297 = vpack.c.bf16 %v296, %v296
    %v298 = vld [vmem:[%s4] sm:$0xf]
    %v299 = vld [vmem:[%s4 + $0x4] sm:$0xf]
    %v300 = vld [vmem:[%s4 + $0x8] sm:$0xf]
    %v301 = vld [vmem:[%s4 + $0xc] sm:$0xf]
    %v302 = vld [vmem:[%s5] sm:$0x1]
    %v304 = vperm.slane %v302, 0
    %v310 = vunpack.c.l.b16 %v298
    %v311 = vunpack.c.l.b16 %v299
    %v312 = vunpack.c.l.b16 %v300
    %v313 = vunpack.c.l.b16 %v301
    %v314 = vpack.c.b16 %v311, %v310
    %v315 = vpack.c.b16 %v313, %v312
    %v319 = vsel %vm145, %v297, 0
    %321 = vmatpush.bf16.msra.mxu0 0
    %322 = vmatpush.bf16.msra.mxu0 0
    %323 = vmatpush.bf16.msra.mxu0 0
    %324 = vmatpush.bf16.msra.mxu0 0
    %325 = vmatpush.bf16.msra.mxu0 0
    %326 = vmatpush.bf16.msra.mxu0 0
    %327 = vmatpush.bf16.msra.mxu0 %v315
    %328 = vmatpush.bf16.msra.mxu0 %v314
    %329 = vmatmul.bf16.gmra.mxu0 %v319
    %v330 = vpop.f32.mrf.mxu0
    %v331 = vadd.f32 %v304, %v330
    %v332 = vpop.f32.mrf.mxu0
    %333 = vdwg.mxu0
    %v334 = vmax.f32 %v331, 0.0
    %v335 = vpack.c.bf16 %v334, %v334
    %v336 = vld [vmem:[#allocation2] sm:$0xf]
    %v337 = vld [vmem:[#allocation2 + $0x4] sm:$0xf]
    %v338 = vld [vmem:[#allocation2 + $0x8] sm:$0xf]
    %v339 = vld [vmem:[#allocation2 + $0xc] sm:$0xf]
    %v340 = vld [vmem:[%s7] sm:$0x1]
    %v342 = vperm.slane %v340, 0
    %v348 = vunpack.c.l.b16 %v336
    %v349 = vunpack.c.l.b16 %v337
    %v350 = vunpack.c.l.b16 %v338
    %v351 = vunpack.c.l.b16 %v339
    %v352 = vpack.c.b16 %v349, %v348
    %v353 = vpack.c.b16 %v351, %v350
    %v357 = vsel %vm145, %v335, 0
    %359 = vmatpush.bf16.msra.mxu0 0
    %360 = vmatpush.bf16.msra.mxu0 0
    %361 = vmatpush.bf16.msra.mxu0 0
    %362 = vmatpush.bf16.msra.mxu0 0
    %363 = vmatpush.bf16.msra.mxu0 0
    %364 = vmatpush.bf16.msra.mxu0 0
    %365 = vmatpush.bf16.msra.mxu0 %v353
    %366 = vmatpush.bf16.msra.mxu0 %v352
    %367 = vmatmul.bf16.gmra.mxu0 %v357
    %v368 = vpop.f32.mrf.mxu0
    %v369 = vadd.f32 %v342, %v368
    %v370 = vpop.f32.mrf.mxu0
    %371 = vdwg.mxu0
    %372 = vst [vmem:[#allocation5] sm:$0xff] %v369
    // Predicated region
    $region38: #{tpu_custom_call.1} parent=1 // pred_check
      _
    $region39: #{tpu_custom_call.1} parent=1 // pred_check_branch
      %374 = sbr.rel (0) target = $region41
    $region40: #{tpu_custom_call.1} parent=1 // pred_region
      %376 = vsyncadd [#allocation4], 0
      %s378 = sshll.u32 [#allocation5], 4
      %s379 = int_to_ptr.vmem [resolvable:$true] %s378
      %s380 = sshll.u32 %s8, 4
      %s381 = int_to_ptr.hbm [resolvable:$true] %s380
      %383 = dma.vmem_to_hbm [thread:$0]  %s379, 128, %s381, [#allocation4]
    $region41: #{tpu_custom_call.1} parent=1 // pred_fallthru
      _
    // Predicated region
    $region42: #{tpu_custom_call.1} parent=1 // pred_check
      _
    $region43: #{tpu_custom_call.1} parent=1 // pred_check_branch
      %385 = sbr.rel (0) target = $region45
    $region44: #{tpu_custom_call.1} parent=1 // pred_region
      %387 = dma.done [#allocation4], 128
    $region45: #{tpu_custom_call.1} parent=1 // pred_fallthru
      _
    %388 = vsyncpa [#allocation3], 1
    %389 = vsyncpa [#allocation4], 1

</llo_original>
